<compile_context>
chip_gen: v7x
topology: tpu7x:2x2x1
jax: 0.10.0
libtpu: 0.0.40
codegen_flags: <defaults>
</compile_context>

<pallas_src>
import functools

import jax
import jax.numpy as jnp
from jax.experimental import pallas as pl
from jax.experimental.pallas import tpu as pltpu


_LANE = 128          # TPU lane width
_MAX_COLS = 2048     # lane-dense slab width cap (multiple of 128)


# ---------------------------------------------------------------------------
# Kernel
# ---------------------------------------------------------------------------
def _relu_kernel(x_ref, o_ref):
    # Default Block activation: nn.ReLU — one VPU max feeding the store slot.
    # (weak-typed 0 preserves dtype: bf16 / int stay put, no promotion)
    o_ref[...] = jnp.maximum(x_ref[...], 0)


# ---------------------------------------------------------------------------
# Tiling helpers
# ---------------------------------------------------------------------------
def _sublane_multiple(dtype) -> int:
    # f32 -> 8, bf16/f16 -> 16, int8/fp8 -> 32 (sub-32-bit dtypes pack sublanes)
    itemsize = jnp.dtype(dtype).itemsize
    return max(8, 32 // max(1, itemsize))


@functools.lru_cache(maxsize=None)
def _generation_params():
    """Per-TPU-generation (block_bytes, vmem_limit_bytes or None)."""
    kind = ""
    try:
        kind = jax.devices()[0].device_kind.lower()
    except Exception:
        pass
    if "v7" in kind:
        # 3.2 TB/s HBM: big blocks amortize the ~0.35 us/step cost; 4x6 MiB
        # (in+out, double-buffered) = 24 MiB stays inside the 30 MiB limit
        # and well under the 64 MiB physical VMEM.
        return 6 * 1024 * 1024, 30 * 1024 * 1024
    if "v6" in kind:
        # v6e: 32 MiB scoped default / 128 MiB physical.
        return 6 * 1024 * 1024, 30 * 1024 * 1024
    if "v5" in kind and ("lite" in kind or "v5e" in kind):
        # v5e: 16 MiB scoped default; 2 MiB block already ~94% amortized.
        return 2 * 1024 * 1024, None
    # v4 / v5p / unknown: conservative budget that fits every default.
    return 3 * 1024 * 1024, 16 * 1024 * 1024


# ---------------------------------------------------------------------------
# Streaming ReLU over a flat buffer whose length is a multiple of 128
# ---------------------------------------------------------------------------
def _relu_flat_aligned(flat: jax.Array) -> jax.Array:
    n = flat.size
    dtype = flat.dtype
    itemsize = jnp.dtype(dtype).itemsize
    sub = _sublane_multiple(dtype)
    block_bytes, vmem_limit = _generation_params()

    # Widest lane-dense slab (free reshape of the contiguous buffer).
    cols = _LANE
    while cols * 2 <= _MAX_COLS and n % (cols * 2) == 0:
        cols *= 2
    rows = n // cols
    x2 = flat.reshape(rows, cols)

    # Row-block: as large as the byte budget allows (rounded to the sublane
    # multiple), balanced across >= 2 grid steps whenever rows permit so
    # v7x's two TensorCores both get work and pipelining stays engaged.
    tm_cap = max(sub, (block_bytes // (cols * itemsize)) // sub * sub)
    if rows < 2 * sub:
        tm, grid_rows = rows, 1                      # full extent: legal tile
    else:
        grid_rows = max(pl.cdiv(rows, tm_cap), 2)
        tm = min(rows, pl.cdiv(pl.cdiv(rows, grid_rows), sub) * sub)
        grid_rows = pl.cdiv(rows, tm)                # ragged last block: masked

    out2 = pl.pallas_call(
        _relu_kernel,
        out_shape=jax.ShapeDtypeStruct((rows, cols), dtype),
        grid=(grid_rows,),
        in_specs=[pl.BlockSpec((tm, cols), lambda i: (i, 0))],
        out_specs=pl.BlockSpec((tm, cols), lambda i: (i, 0)),
        # In-place when the input is donated; no second full-size HBM buffer.
        input_output_aliases={0: 0},
        compiler_params=pltpu.CompilerParams(
            dimension_semantics=("parallel",),
            vmem_limit_bytes=vmem_limit,
        ),
    )(x2)
    return out2.reshape(-1)


# ---------------------------------------------------------------------------
# Wrapper: Block forward (element-wise activation only)
# ---------------------------------------------------------------------------
def block_forward(x: jax.Array, activation: str = "relu") -> jax.Array:
    """Element-wise forward of the base Block.

    activation="relu"     -> default Block(activation_function=nn.ReLU)
    activation="identity" -> Block(activation_function=None) / Identity module
    """
    if activation == "identity":
        # Identity.forward(x) -> x : free, no kernel / HBM traffic at all.
        return x
    if activation != "relu":
        raise ValueError(f"unsupported activation: {activation}")

    n = x.size
    if n == 0:
        return x
    flat = x.reshape(-1)

    head_n = (n // _LANE) * _LANE
    if head_n == n:
        # Common case (typical NN shapes): single streaming pass, no padding.
        out_flat = _relu_flat_aligned(flat)
    elif head_n == 0:
        # Tiny tensor (< 128 elements): not worth a kernel launch.
        out_flat = jnp.maximum(flat, 0)
    else:
        # Awkward size: kernel on the 128-aligned prefix, plain max on the
        # <128-element tail.  (Rare path; avoids the pad + slice double pass.)
        head_out = _relu_flat_aligned(flat[:head_n])
        tail_out = jnp.maximum(flat[head_n:], 0)
        out_flat = jnp.concatenate([head_out, tail_out])

    return out_flat.reshape(x.shape)


# ---------------------------------------------------------------------------
# Demo / self-check
# ---------------------------------------------------------------------------
if __name__ == "__main__":
    key = jax.random.PRNGKey(0)
    k1, k2, k3, k4 = jax.random.split(key, 4)

    # NCHW input: batch=2, channels=4, spatial=16x16 (128-aligned fast path).
    x = jax.random.normal(k1, (2, 4, 16, 16), dtype=jnp.float32)
    y_relu = block_forward(x, activation="relu")        # default Block (ReLU)
    y_id = block_forward(x, activation="identity")      # activation_function=None
    jax.block_until_ready(y_relu)
    jax.block_until_ready(y_id)
    assert y_relu.shape == x.shape and y_relu.dtype == x.dtype
    assert jnp.array_equal(y_relu, jnp.maximum(x, 0.0))
    assert jnp.array_equal(y_id, x)

    # bf16 exercises dtype-aware sublane tiling.
    xb = x.astype(jnp.bfloat16)
    yb = block_forward(xb, activation="relu")
    jax.block_until_ready(yb)
    assert yb.dtype == jnp.bfloat16
    assert jnp.array_equal(yb, jnp.maximum(xb, 0))

    # Larger slab: multi-step parallel grid + balanced ragged last block.
    x2 = jax.random.normal(k2, (2, 10, 32, 64), dtype=jnp.float32)  # 40960 elems
    y2 = block_forward(x2)
    jax.block_until_ready(y2)
    assert jnp.array_equal(y2, jnp.maximum(x2, 0.0))

    # Awkward element count (655 = 5*128 + 15): prefix kernel + tail path.
    x3 = jax.random.normal(k3, (5, 131), dtype=jnp.float32)
    y3 = block_forward(x3)
    jax.block_until_ready(y3)
    assert jnp.array_equal(y3, jnp.maximum(x3, 0.0))

    # Tiny tensor (< 128 elements): no-kernel path.
    x4 = jax.random.normal(k4, (3, 5), dtype=jnp.float32)
    y4 = block_forward(x4)
    jax.block_until_ready(y4)
    assert jnp.array_equal(y4, jnp.maximum(x4, 0.0))

    print("KERNEL_OK")
</pallas_src>

<mosaic_0001>
module attributes {stable_mosaic.version = 11 : i64} {
  func.func @_relu_kernel(%arg0: i32, %arg1: memref<1x2048xf32, #tpu.memory_space<vmem>>, %arg2: memref<1x2048xf32, #tpu.memory_space<vmem>>) attributes {dimension_semantics = [#tpu.dimension_semantics<parallel>], iteration_bounds = array<i64: 1>, scalar_prefetch = 0 : i64, scratch_operands = 0 : i64, tpu.core_type = #tpu.core_type<tc>, window_params = [{transform_indices = @transform_0, window_bounds = array<i64: 1, 2048>}, {transform_indices = @transform_1, window_bounds = array<i64: 1, 2048>}]} {
    %c0 = arith.constant 0 : index
    %c0_0 = arith.constant 0 : index
    %0 = vector.load %arg1[%c0, %c0_0] : memref<1x2048xf32, #tpu.memory_space<vmem>>, vector<1x2048xf32>
    %cst = arith.constant 0.000000e+00 : f32
    %1 = vector.broadcast %cst : f32 to vector<1x2048xf32>
    %2 = arith.maximumf %0, %1 : vector<1x2048xf32>
    %c0_1 = arith.constant 0 : index
    %c0_2 = arith.constant 0 : index
    %3 = vector.load %arg2[%c0_1, %c0_2] : memref<1x2048xf32, #tpu.memory_space<vmem>>, vector<1x2048xf32>
    tpu.vector_store %arg2[%c0_1, %c0_2], %2 {strides = array<i32>} : memref<1x2048xf32, #tpu.memory_space<vmem>>, vector<1x2048xf32>,
    return
  }
  func.func @transform_0(%arg0: i32) -> (i32, i32) {
    %c0_i32 = arith.constant 0 : i32
    %c0_i32_0 = arith.constant 0 : i32
    return %arg0, %c0_i32 : i32, i32
  }
  func.func @transform_1(%arg0: i32) -> (i32, i32) {
    %c0_i32 = arith.constant 0 : i32
    %c0_i32_0 = arith.constant 0 : i32
    return %arg0, %c0_i32 : i32, i32
  }
}

</mosaic_0001>

<llo_original>
// kernel: tpu_custom_call.1
$region0: #{tpu_custom_call.1}
  #allocation0 [shape = 'u32[]', space=smem, size = 0x4, offset = 0x4, fixed_abs, tag = 'smem constant byte address 0x4 - core index']
  #allocation1 [shape = 'u32[144,128]{1,0:T(1,128)}', space=vmem, size = 0x12000, scoped, tag = 'internal scratch']
  %s0 = inlined_call_operand.hbm [shape: f32[1,2048], index: 0, kind: input, shape index: {}, may-alias: {0,1}]
  %s1 = inlined_call_operand.hbm [shape: f32[1,2048], index: 1, kind: output, shape index: {}, may-alias: {0,1}]
  %s2 = sld [smem:[#allocation0]]
  $region18: #{tpu_custom_call.1} parent=0
    _
  %s4 = ssub.s32 1, %s2
  %s5 = scalar_select 0, %s4, %s2
  $region1: #{tpu_custom_call.1} parent=0
    #allocation2 [shape = 'u8[8192]{0}', space=vmem, size = 0x2000, scoped, tag = 'input window, operand 0, single buffered']
    #allocation3 [shape = 's32[1]{0}', space=sflag, size = 0x4, scoped, tag = 'scoped memory for tpu_custom_call.1']
    #allocation4 [shape = 's32[1]{0}', space=sflag, size = 0x4, scoped, tag = 'scoped memory for tpu_custom_call.1']
    #allocation5 [shape = 'u8[8192]{0}', space=vmem, size = 0x2000, scoped, tag = 'output window, operand 0, single buffered']
    %6 = vsyncpa [#allocation3], 0
    %7 = vsyncpa [#allocation4], 0
    // Predicated region
    $region2: #{tpu_custom_call.1} parent=1 // pred_check
      _
    $region3: #{tpu_custom_call.1} parent=1 // pred_check_branch
      %9 = sbr.rel (0) target = $region5
    $region4: #{tpu_custom_call.1} parent=1 // pred_region
      %s11 = ssub.s32 256, 256
      %12 = vsyncadd [#allocation3], %s11
      %s14 = sshll.u32 [#allocation2], 4
      %s15 = int_to_ptr.vmem [resolvable:$true] %s14
      %17 = dma.hbm_to_vmem [thread:$0]  %s0, 256, %s15, [#allocation3]
    $region5: #{tpu_custom_call.1} parent=1 // pred_fallthru
      _
    // Predicated region
    $region6: #{tpu_custom_call.1} parent=1 // pred_check
      _
    $region7: #{tpu_custom_call.1} parent=1 // pred_check_branch
      %19 = sbr.rel (0) target = $region9
    $region8: #{tpu_custom_call.1} parent=1 // pred_region
      %20 = dma.done [#allocation3], 256
    $region9: #{tpu_custom_call.1} parent=1 // pred_fallthru
      _
    %v21 = vld [vmem:[#allocation2] sm:$0xff]
    %v22 = vld [vmem:[#allocation2 + $0x8] sm:$0xff]
    %v23 = vmax.f32 %v21, 0.0
    %v24 = vmax.f32 %v22, 0.0
    %25 = vst [vmem:[#allocation5] sm:$0xff] %v23
    %26 = vst [vmem:[#allocation5 + $0x8] sm:$0xff] %v24
    // Predicated region
    $region10: #{tpu_custom_call.1} parent=1 // pred_check
      _
    $region11: #{tpu_custom_call.1} parent=1 // pred_check_branch
      %28 = sbr.rel (0) target = $region13
    $region12: #{tpu_custom_call.1} parent=1 // pred_region
      %s30 = ssub.s32 256, 256
      %31 = vsyncadd [#allocation4], %s30
      %s33 = sshll.u32 [#allocation5], 4
      %s34 = int_to_ptr.vmem [resolvable:$true] %s33
      %36 = dma.vmem_to_hbm [thread:$0]  %s34, 256, %s1, [#allocation4]
    $region13: #{tpu_custom_call.1} parent=1 // pred_fallthru
      _
    // Predicated region
    $region14: #{tpu_custom_call.1} parent=1 // pred_check
      _
    $region15: #{tpu_custom_call.1} parent=1 // pred_check_branch
      %38 = sbr.rel (0) target = $region17
    $region16: #{tpu_custom_call.1} parent=1 // pred_region
      %39 = dma.done [#allocation4], 256
    $region17: #{tpu_custom_call.1} parent=1 // pred_fallthru
      _
    %40 = vsyncpa [#allocation3], 1
    %41 = vsyncpa [#allocation4], 1

</llo_original>
